<compile_context>
chip_gen: v7x
topology: tpu7x:2x2x1
jax: 0.10.0
libtpu: 0.0.40
codegen_flags: <defaults>
</compile_context>

<pallas_src>
import math
import functools

import jax
import jax.numpy as jnp
from jax.experimental import pallas as pl
from jax.experimental.pallas import tpu as pltpu


# ------------------------------ helpers -------------------------------------

_PAD = 128  # token axis padded to a multiple of this


def _round_up(x, m):
    return ((x + m - 1) // m) * m


def _pick_tile(dim, target):
    """Largest tile <= target that evenly divides dim (dim is a multiple of 128
    after padding, or a small full dimension)."""
    t = min(target, dim)
    while t > 1 and dim % t != 0:
        t //= 2
    return max(t, 1)


def _pick_head_group(num_heads, v_head, max_group=8):
    """Heads processed per MLA grid step; chosen so the attention output block
    is lane-dense (G*v_head % 128 == 0) whenever possible."""
    best = None
    for g in range(1, min(num_heads, max_group) + 1):
        if num_heads % g == 0 and (g * v_head) % 128 == 0:
            best = g
    return best if best is not None else num_heads


def rope_cs_table(positions, rope_dim, theta):
    """Packed [cos | sin] table, (T, rope_dim) f32 (single lane-packed input)."""
    inv_freq = 1.0 / (theta ** (jnp.arange(0, rope_dim, 2, dtype=jnp.float32)
                                / rope_dim))
    freqs = positions.astype(jnp.float32)[:, None] * inv_freq[None, :]
    return jnp.concatenate([jnp.cos(freqs), jnp.sin(freqs)], axis=-1)


# ------------------------------- RMSNorm -------------------------------------

def _rmsnorm_kernel(x_ref, g_ref, o_ref, *, eps):
    x = x_ref[...].astype(jnp.float32)
    var = jnp.mean(x * x, axis=-1, keepdims=True)
    o_ref[...] = (x * jax.lax.rsqrt(var + eps) * g_ref[...]).astype(o_ref.dtype)


def rmsnorm(x, gamma, eps, out_dtype=jnp.bfloat16, tm=256):
    T, D = x.shape
    tm = _pick_tile(T, tm)
    return pl.pallas_call(
        functools.partial(_rmsnorm_kernel, eps=eps),
        grid=(T // tm,),
        in_specs=[pl.BlockSpec((tm, D), lambda i: (i, 0)),
                  pl.BlockSpec((1, D), lambda i: (0, 0))],
        out_specs=pl.BlockSpec((tm, D), lambda i: (i, 0)),
        out_shape=jax.ShapeDtypeStruct((T, D), out_dtype),
        compiler_params=pltpu.CompilerParams(dimension_semantics=("parallel",)),
    )(x, gamma.reshape(1, D))


# ----------------- fused q_a_proj+norm and kv_a_proj+norm+RoPE ---------------

def _qkv_a_kernel(x_ref, qaw_ref, qag_ref, kvaw_ref, kvag_ref, cs_ref,
                  q_ref, k_ref, *, kv_lora, rope, eps):
    x = x_ref[...]

    # q_a_proj + q_a_layernorm
    q = jnp.dot(x, qaw_ref[...], preferred_element_type=jnp.float32)
    var = jnp.mean(q * q, axis=-1, keepdims=True)
    q_ref[...] = (q * jax.lax.rsqrt(var + eps) * qag_ref[...]).astype(q_ref.dtype)

    # kv_a_proj + kv_a_layernorm (latent) + RoPE on k_pe (no concatenates:
    # direct slice stores into the output block).
    lat = jnp.dot(x, kvaw_ref[...], preferred_element_type=jnp.float32)
    ckv = lat[:, :kv_lora]
    var2 = jnp.mean(ckv * ckv, axis=-1, keepdims=True)
    k_ref[:, :kv_lora] = (ckv * jax.lax.rsqrt(var2 + eps)
                          * kvag_ref[...]).astype(k_ref.dtype)

    half = rope // 2
    k_pe = lat[:, kv_lora:]
    x1, x2 = k_pe[:, :half], k_pe[:, half:]
    c, s = cs_ref[:, :half], cs_ref[:, half:]
    k_ref[:, kv_lora:kv_lora + half] = (x1 * c - x2 * s).astype(k_ref.dtype)
    k_ref[:, kv_lora + half:] = (x2 * c + x1 * s).astype(k_ref.dtype)


def qkv_a_proj(x, q_a_w, q_a_ln, kv_a_w, kv_a_ln, cs, kv_lora, rope, eps, tm=256):
    T, D = x.shape
    q_lora = q_a_w.shape[1]
    W = kv_a_w.shape[1]                              # kv_lora + rope
    tm = _pick_tile(T, tm)
    return pl.pallas_call(
        functools.partial(_qkv_a_kernel, kv_lora=kv_lora, rope=rope, eps=eps),
        grid=(T // tm,),
        in_specs=[pl.BlockSpec((tm, D), lambda i: (i, 0)),
                  pl.BlockSpec((D, q_lora), lambda i: (0, 0)),
                  pl.BlockSpec((1, q_lora), lambda i: (0, 0)),
                  pl.BlockSpec((D, W), lambda i: (0, 0)),
                  pl.BlockSpec((1, kv_lora), lambda i: (0, 0)),
                  pl.BlockSpec((tm, rope), lambda i: (i, 0))],
        out_specs=[pl.BlockSpec((tm, q_lora), lambda i: (i, 0)),
                   pl.BlockSpec((tm, W), lambda i: (i, 0))],
        out_shape=(jax.ShapeDtypeStruct((T, q_lora), jnp.bfloat16),
                   jax.ShapeDtypeStruct((T, W), jnp.bfloat16)),
        compiler_params=pltpu.CompilerParams(dimension_semantics=("parallel",)),
    )(x, q_a_w, q_a_ln.reshape(1, q_lora), kv_a_w, kv_a_ln.reshape(1, kv_lora), cs)


# ---------------------- flash-style MLA attention kernel ---------------------

def _mla_flash_kernel(qlat_ref, qbw_ref, wkc_ref, wvc_ref, k_ref, cs_ref,
                      o_ref, q_s, m_s, l_s, acc_s, *,
                      scaling, nope, rope, kv_lora, v_head, tq, tk):
    qi = pl.program_id(1)
    ki = pl.program_id(2)
    G = qbw_ref.shape[0]
    half = rope // 2

    @pl.when(ki == 0)
    def _():
        # per-head q_b projection + RoPE + w_kc absorb, cached in VMEM scratch
        c, s = cs_ref[:, :half], cs_ref[:, half:]
        for g in range(G):
            qh = jnp.dot(qlat_ref[...], qbw_ref[g],
                         preferred_element_type=jnp.float32)   # (tq, nope+rope)
            q_nope = qh[:, :nope]
            x1, x2 = qh[:, nope:nope + half], qh[:, nope + half:]
            q_abs = jnp.dot(q_nope.astype(wkc_ref.dtype), wkc_ref[g],
                            preferred_element_type=jnp.float32)  # (tq, kv_lora)
            rs = slice(g * tq, (g + 1) * tq)
            q_s[rs, :kv_lora] = (q_abs * scaling).astype(q_s.dtype)
            q_s[rs, kv_lora:kv_lora + half] = ((x1 * c - x2 * s)
                                               * scaling).astype(q_s.dtype)
            q_s[rs, kv_lora + half:] = ((x2 * c + x1 * s)
                                        * scaling).astype(q_s.dtype)
        m_s[...] = jnp.full_like(m_s, -1e30)
        l_s[...] = jnp.zeros_like(l_s)
        acc_s[...] = jnp.zeros_like(acc_s)

    @pl.when(ki * tk <= qi * tq + (tq - 1))        # skip fully-masked kv blocks
    def _():
        start = pl.multiple_of(ki * tk, tk)
        k = k_ref[pl.ds(start, tk), :]                        # (tk, kv_lora+rope)
        s_mat = jax.lax.dot_general(q_s[...], k, (((1,), (1,)), ((), ())),
                                    preferred_element_type=jnp.float32)
        row = qi * tq + jax.lax.broadcasted_iota(
            jnp.int32, (G, tq, tk), 1).reshape(G * tq, tk)
        col = ki * tk + jax.lax.broadcasted_iota(jnp.int32, (G * tq, tk), 1)
        s_mat = jnp.where(col <= row, s_mat, -1e30)
        m_prev = m_s[...]
        m_new = jnp.maximum(m_prev, jnp.max(s_mat, axis=-1, keepdims=True))
        alpha = jnp.exp(m_prev - m_new)
        p = jnp.exp(s_mat - m_new)
        l_s[...] = alpha * l_s[...] + jnp.sum(p, axis=-1, keepdims=True)
        acc_s[...] = alpha * acc_s[...] + jax.lax.dot_general(
            p.astype(k.dtype), k[:, :kv_lora], (((1,), (0,)), ((), ())),
            preferred_element_type=jnp.float32)
        m_s[...] = m_new

    @pl.when(ki == pl.num_programs(2) - 1)
    def _():
        out = acc_s[...] * pl.reciprocal(l_s[...], approx=True)  # (G*tq, kv_lora)
        for g in range(G):
            o_g = jnp.dot(out[g * tq:(g + 1) * tq].astype(wvc_ref.dtype),
                          wvc_ref[g], preferred_element_type=jnp.float32)
            o_ref[:, g * v_head:(g + 1) * v_head] = o_g.astype(o_ref.dtype)


def mla_attention(q_lat, q_b_w, w_kc, w_vc, k_input, cs, cfg, tq=256, tk=256):
    T, q_lora = q_lat.shape
    H = cfg['num_heads']
    nope, rope = cfg['qk_nope_head_dim'], cfg['qk_rope_head_dim']
    kv_lora = cfg['kv_lora_rank']
    v_head = cfg['v_head_dim']
    dk = kv_lora + rope
    scaling = (nope + rope) ** -0.5
    tq = _pick_tile(T, tq)
    tk = _pick_tile(T, tk)
    G = _pick_head_group(H, v_head)
    Hg = H // G
    grid = (Hg, T // tq, T // tk)

    flops = (2 * T * H * (q_lora * (nope + rope) + nope * kv_lora
                          + kv_lora * v_head)
             + T * T * H * (dk + kv_lora))          # causal ~ half of 2*T*T
    bytes_acc = (Hg * T * q_lora * 2
                 + H * (q_lora * (nope + rope) + nope * kv_lora
                        + kv_lora * v_head) * 2
                 + T * dk * 2 + T * H * v_head * 2)

    return pl.pallas_call(
        functools.partial(_mla_flash_kernel, scaling=scaling, nope=nope,
                          rope=rope, kv_lora=kv_lora, v_head=v_head,
                          tq=tq, tk=tk),
        grid=grid,
        in_specs=[
            pl.BlockSpec((tq, q_lora), lambda hg, i, j: (i, 0)),
            pl.BlockSpec((G, q_lora, nope + rope), lambda hg, i, j: (hg, 0, 0)),
            pl.BlockSpec((G, nope, kv_lora), lambda hg, i, j: (hg, 0, 0)),
            pl.BlockSpec((G, kv_lora, v_head), lambda hg, i, j: (hg, 0, 0)),
            # shared latent KV: full-array block, VMEM-resident, DMA'd once
            pl.BlockSpec((T, dk), lambda hg, i, j: (0, 0)),
            pl.BlockSpec((tq, rope), lambda hg, i, j: (i, 0)),
        ],
        out_specs=pl.BlockSpec((tq, G * v_head), lambda hg, i, j: (i, hg)),
        out_shape=jax.ShapeDtypeStruct((T, H * v_head), jnp.bfloat16),
        scratch_shapes=[
            pltpu.VMEM((G * tq, dk), jnp.bfloat16),   # scaled q (absorbed+rope)
            pltpu.VMEM((G * tq, 1), jnp.float32),     # running max
            pltpu.VMEM((G * tq, 1), jnp.float32),     # running sum
            pltpu.VMEM((G * tq, kv_lora), jnp.float32),  # accumulator
        ],
        compiler_params=pltpu.CompilerParams(
            dimension_semantics=("parallel", "parallel", "arbitrary")),
        cost_estimate=pl.CostEstimate(flops=int(flops),
                                      transcendentals=int(H * T * T // 2),
                                      bytes_accessed=int(bytes_acc)),
    )(q_lat, q_b_w, w_kc, w_vc, k_input, cs)


# ---------------- o_proj (deep-K matmul) fused with add + RMSNorm ------------

def _oproj_add_norm_kernel(a_ref, w_ref, r_ref, g_ref, nr_ref, no_ref, *,
                           eps, scale):
    j = pl.program_id(1)

    @pl.when(j == 0)
    def _():
        nr_ref[...] = jnp.zeros_like(nr_ref)

    nr_ref[...] += jnp.dot(a_ref[...], w_ref[...],
                           preferred_element_type=jnp.float32)

    @pl.when(j == pl.num_programs(1) - 1)
    def _():
        x = r_ref[...] + nr_ref[...] * scale       # new residual (f32)
        nr_ref[...] = x
        var = jnp.mean(x * x, axis=-1, keepdims=True)
        no_ref[...] = (x * jax.lax.rsqrt(var + eps) * g_ref[...]).astype(no_ref.dtype)


def o_proj_add_norm(attn, o_w, resid, gamma, scale, eps,
                    norm_dtype=jnp.bfloat16, tm=256, tk=512):
    T, Hv = attn.shape
    D = o_w.shape[1]
    tm = _pick_tile(T, tm)
    tk = _pick_tile(Hv, tk)
    grid = (T // tm, Hv // tk)
    return pl.pallas_call(
        functools.partial(_oproj_add_norm_kernel, eps=eps, scale=scale),
        grid=grid,
        in_specs=[pl.BlockSpec((tm, tk), lambda i, j: (i, j)),
                  pl.BlockSpec((tk, D), lambda i, j: (j, 0)),
                  pl.BlockSpec((tm, D), lambda i, j: (i, 0)),
                  pl.BlockSpec((1, D), lambda i, j: (0, 0))],
        out_specs=[pl.BlockSpec((tm, D), lambda i, j: (i, 0)),
                   pl.BlockSpec((tm, D), lambda i, j: (i, 0))],
        out_shape=(jax.ShapeDtypeStruct((T, D), jnp.float32),
                   jax.ShapeDtypeStruct((T, D), norm_dtype)),
        compiler_params=pltpu.CompilerParams(
            dimension_semantics=("parallel", "arbitrary")),
        cost_estimate=pl.CostEstimate(
            flops=int(2 * T * Hv * D), transcendentals=0,
            bytes_accessed=int(T * Hv * 2 + (T // tm) * Hv * D * 2
                               + 3 * T * D * 4)),
    )(attn, o_w, resid, gamma.reshape(1, D))


# ---------------------- MLP fused with add + RMSNorm -------------------------

def _mlp_add_norm_kernel(x_ref, wg_ref, wu_ref, wd_ref, r_ref, g_ref,
                         nr_ref, no_ref, *, eps, scale):
    j = pl.program_id(1)

    @pl.when(j == 0)
    def _():
        nr_ref[...] = jnp.zeros_like(nr_ref)

    x = x_ref[...]
    gt = jnp.dot(x, wg_ref[...], preferred_element_type=jnp.float32)
    up = jnp.dot(x, wu_ref[...], preferred_element_type=jnp.float32)
    act = (gt * jax.nn.sigmoid(gt) * up).astype(wd_ref.dtype)     # SiluAndMul
    nr_ref[...] += jnp.dot(act, wd_ref[...], preferred_element_type=jnp.float32)

    @pl.when(j == pl.num_programs(1) - 1)
    def _():
        h = r_ref[...] + nr_ref[...] * scale       # new residual (f32)
        nr_ref[...] = h
        var = jnp.mean(h * h, axis=-1, keepdims=True)
        no_ref[...] = (h * jax.lax.rsqrt(var + eps) * g_ref[...]).astype(no_ref.dtype)


def mlp_add_norm(x, w_gate, w_up, w_down, resid, gamma, scale, eps,
                 norm_dtype=jnp.bfloat16, tm=256, ti=512):
    T, D = x.shape
    I = w_gate.shape[1]
    tm = _pick_tile(T, tm)
    ti = _pick_tile(I, ti)
    grid = (T // tm, I // ti)
    return pl.pallas_call(
        functools.partial(_mlp_add_norm_kernel, eps=eps, scale=scale),
        grid=grid,
        in_specs=[pl.BlockSpec((tm, D), lambda i, j: (i, 0)),
                  pl.BlockSpec((D, ti), lambda i, j: (0, j)),
                  pl.BlockSpec((D, ti), lambda i, j: (0, j)),
                  pl.BlockSpec((ti, D), lambda i, j: (j, 0)),
                  pl.BlockSpec((tm, D), lambda i, j: (i, 0)),
                  pl.BlockSpec((1, D), lambda i, j: (0, 0))],
        out_specs=[pl.BlockSpec((tm, D), lambda i, j: (i, 0)),
                   pl.BlockSpec((tm, D), lambda i, j: (i, 0))],
        out_shape=(jax.ShapeDtypeStruct((T, D), jnp.float32),
                   jax.ShapeDtypeStruct((T, D), norm_dtype)),
        compiler_params=pltpu.CompilerParams(
            dimension_semantics=("parallel", "arbitrary")),
        cost_estimate=pl.CostEstimate(
            flops=int(6 * T * D * I), transcendentals=int(T * I),
            bytes_accessed=int(T * D * 2 + (T // tm) * 3 * D * I * 2
                               + 3 * T * D * 4)),
    )(x, w_gate, w_up, w_down, resid, gamma.reshape(1, D))


# ------------------------------ model glue -----------------------------------

def minicpm3_forward(input_ids, positions, params, cfg):
    T = input_ids.shape[0]
    T_pad = max(_round_up(T, _PAD), _PAD)
    pad = T_pad - T
    if pad:
        input_ids = jnp.concatenate(
            [input_ids, jnp.zeros((pad,), input_ids.dtype)])
        positions = jnp.concatenate(
            [positions, positions[-1] + 1 + jnp.arange(pad, dtype=positions.dtype)])

    hidden = params['embed'][input_ids].astype(jnp.float32) * cfg['scale_emb']
    cs = rope_cs_table(positions, cfg['qk_rope_head_dim'], cfg['rope_theta'])
    res_scale = cfg['scale_depth'] / math.sqrt(cfg['num_layers'])
    layers = params['layers']
    L = len(layers)

    normed = rmsnorm(hidden, layers[0]['input_ln'], cfg['eps'])
    for i, p in enumerate(layers):
        q_lat, k_inp = qkv_a_proj(normed, p['q_a_w'], p['q_a_ln'],
                                  p['kv_a_w'], p['kv_a_ln'], cs,
                                  cfg['kv_lora_rank'], cfg['qk_rope_head_dim'],
                                  cfg['eps'])
        attn = mla_attention(q_lat, p['q_b_w'], p['w_kc'], p['w_vc'],
                             k_inp, cs, cfg)                # (T, H*v_head) bf16
        hidden, normed = o_proj_add_norm(attn, p['o_w'], hidden, p['post_ln'],
                                         res_scale, cfg['eps'])
        next_gamma = layers[i + 1]['input_ln'] if i + 1 < L else params['norm_w']
        norm_dtype = jnp.bfloat16 if i + 1 < L else jnp.float32
        hidden, normed = mlp_add_norm(normed, p['gate_w'], p['up_w'], p['down_w'],
                                      hidden, next_gamma, res_scale, cfg['eps'],
                                      norm_dtype=norm_dtype)
    return normed[:T]            # == RMSNorm(final hidden) * norm_w


# ------------------------------ parameters -----------------------------------

def init_params(key, cfg):
    D = cfg['hidden_size']; H = cfg['num_heads']
    nope, rope = cfg['qk_nope_head_dim'], cfg['qk_rope_head_dim']
    q_lora, kv_lora = cfg['q_lora_rank'], cfg['kv_lora_rank']
    v_head = cfg['v_head_dim']; inter = cfg['intermediate_size']
    V = cfg['vocab_size']

    def nrm(k, shape, scale=0.02, dtype=jnp.bfloat16):
        return (jax.random.normal(k, shape, dtype=jnp.float32) * scale).astype(dtype)

    keys = jax.random.split(key, cfg['num_layers'] + 1)
    params = {'embed': nrm(keys[0], (V, D), dtype=jnp.float32),
              'norm_w': jnp.ones((D,), jnp.float32),
              'layers': []}
    for i in range(cfg['num_layers']):
        lk = jax.random.split(keys[i + 1], 9)
        params['layers'].append({
            'input_ln': jnp.ones((D,), jnp.float32),
            'post_ln': jnp.ones((D,), jnp.float32),
            'q_a_w': nrm(lk[0], (D, q_lora)),
            'q_a_ln': jnp.ones((q_lora,), jnp.float32),
            'q_b_w': nrm(lk[1], (H, q_lora, nope + rope)),   # head-major q_b_proj
            'kv_a_w': nrm(lk[2], (D, kv_lora + rope)),
            'kv_a_ln': jnp.ones((kv_lora,), jnp.float32),
            'w_kc': nrm(lk[3], (H, nope, kv_lora)),
            'w_vc': nrm(lk[4], (H, kv_lora, v_head)),
            'o_w': nrm(lk[5], (H * v_head, D)),              # head-major flattened
            'gate_w': nrm(lk[6], (D, inter)),
            'up_w': nrm(lk[7], (D, inter)),
            'down_w': nrm(lk[8], (inter, D)),
        })
    return params


# --------------------------------- main --------------------------------------

if __name__ == "__main__":
    cfg = dict(
        vocab_size=64,
        hidden_size=64,
        num_heads=2,
        qk_nope_head_dim=16,
        qk_rope_head_dim=8,
        v_head_dim=32,            # hidden_size // num_heads
        q_lora_rank=32,
        kv_lora_rank=32,
        intermediate_size=128,
        num_layers=2,
        eps=1e-6,
        rope_theta=10000.0,
        scale_emb=12.0,
        scale_depth=1.4,
    )
    key = jax.random.PRNGKey(0)
    pkey, ikey = jax.random.split(key)
    params = init_params(pkey, cfg)

    T = 8
    input_ids = jax.random.randint(ikey, (T,), 0, cfg['vocab_size'])
    positions = jnp.arange(T, dtype=jnp.int32)

    out = minicpm3_forward(input_ids, positions, params, cfg)
    out = jax.block_until_ready(out)
    assert out.shape == (T, cfg['hidden_size'])
    assert bool(jnp.all(jnp.isfinite(out)))
    print("KERNEL_OK")
</pallas_src>

<mosaic_0001>
module attributes {stable_mosaic.version = 11 : i64} {
  func.func @_rmsnorm_kernel(%arg0: i32, %arg1: memref<128x64xf32, #tpu.memory_space<vmem>>, %arg2: memref<1x64xf32, #tpu.memory_space<vmem>>, %arg3: memref<128x64xbf16, #tpu.memory_space<vmem>>) attributes {dimension_semantics = [#tpu.dimension_semantics<parallel>], iteration_bounds = array<i64: 1>, scalar_prefetch = 0 : i64, scratch_operands = 0 : i64, tpu.core_type = #tpu.core_type<tc>, window_params = [{transform_indices = @transform_0, window_bounds = array<i64: 128, 64>}, {pipeline_mode = #tpu.pipeline_mode<synchronous>, transform_indices = @transform_1, window_bounds = array<i64: 1, 64>}, {transform_indices = @transform_2, window_bounds = array<i64: 128, 64>}]} {
    %c0 = arith.constant 0 : index
    %c0_0 = arith.constant 0 : index
    %0 = vector.load %arg1[%c0, %c0_0] : memref<128x64xf32, #tpu.memory_space<vmem>>, vector<128x64xf32>
    %1 = arith.mulf %0, %0 : vector<128x64xf32>
    %cst = arith.constant dense<0.000000e+00> : vector<128xf32>
    %2 = vector.multi_reduction <add>, %1, %cst [1] : vector<128x64xf32> to vector<128xf32>
    %3 = vector.shape_cast %2 : vector<128xf32> to vector<128x1xf32>
    %cst_1 = arith.constant 6.400000e+01 : f32
    %4 = vector.broadcast %cst_1 : f32 to vector<128x1xf32>
    %5 = arith.divf %3, %4 : vector<128x1xf32>
    %cst_2 = arith.constant 9.99999997E-7 : f32
    %6 = vector.broadcast %cst_2 : f32 to vector<128x1xf32>
    %7 = arith.addf %5, %6 : vector<128x1xf32>
    %8 = math.rsqrt %7 : vector<128x1xf32>
    %9 = vector.broadcast %8 : vector<128x1xf32> to vector<128x64xf32>
    %10 = arith.mulf %0, %9 : vector<128x64xf32>
    %c0_3 = arith.constant 0 : index
    %c0_4 = arith.constant 0 : index
    %11 = vector.load %arg2[%c0_3, %c0_4] : memref<1x64xf32, #tpu.memory_space<vmem>>, vector<1x64xf32>
    %12 = vector.broadcast %11 : vector<1x64xf32> to vector<128x64xf32>
    %13 = arith.mulf %10, %12 : vector<128x64xf32>
    %14 = arith.truncf %13 : vector<128x64xf32> to vector<128x64xbf16>
    %c0_5 = arith.constant 0 : index
    %c0_6 = arith.constant 0 : index
    %15 = vector.load %arg3[%c0_5, %c0_6] : memref<128x64xbf16, #tpu.memory_space<vmem>>, vector<128x64xbf16>
    tpu.vector_store %arg3[%c0_5, %c0_6], %14 {strides = array<i32>} : memref<128x64xbf16, #tpu.memory_space<vmem>>, vector<128x64xbf16>,
    return
  }
  func.func @transform_0(%arg0: i32) -> (i32, i32) {
    %c0_i32 = arith.constant 0 : i32
    %c0_i32_0 = arith.constant 0 : i32
    return %arg0, %c0_i32 : i32, i32
  }
  func.func @transform_1(%arg0: i32) -> (i32, i32) {
    %c0_i32 = arith.constant 0 : i32
    %c0_i32_0 = arith.constant 0 : i32
    %c0_i32_1 = arith.constant 0 : i32
    return %c0_i32, %c0_i32_0 : i32, i32
  }
  func.func @transform_2(%arg0: i32) -> (i32, i32) {
    %c0_i32 = arith.constant 0 : i32
    %c0_i32_0 = arith.constant 0 : i32
    return %arg0, %c0_i32 : i32, i32
  }
}

</mosaic_0001>

<llo_original>
// kernel: tpu_custom_call.1
$region0: #{tpu_custom_call.1}
  #allocation0 [shape = 'u32[]', space=smem, size = 0x4, offset = 0x4, fixed_abs, tag = 'smem constant byte address 0x4 - core index']
  #allocation1 [shape = 'u32[144,128]{1,0:T(1,128)}', space=vmem, size = 0x12000, scoped, tag = 'internal scratch']
  %s0 = inlined_call_operand.vmem [shape: f32[128,64], index: 0, kind: input, shape index: {}]
  %s1 = inlined_call_operand.vmem [shape: f32[1,64], index: 1, kind: input, shape index: {}]
  %s2 = inlined_call_operand.vmem [shape: bf16[128,64], index: 2, kind: output, shape index: {}]
  %s3 = sld [smem:[#allocation0]]
  $region18: #{tpu_custom_call.1} parent=0
    _
  %s5 = ssub.s32 1, %s3
  %s6 = scalar_select 0, %s5, %s3
  // Predicated region
  $region2: #{tpu_custom_call.1} parent=0 // pred_check
    _
  $region3: #{tpu_custom_call.1} parent=0 // pred_check_branch
    %8 = sbr.rel (0) target = $region5
  $region4: #{tpu_custom_call.1} parent=0 // pred_region
    _
  $region5: #{tpu_custom_call.1} parent=0 // pred_fallthru
    _
  // Predicated region
  $region6: #{tpu_custom_call.1} parent=0 // pred_check
    _
  $region7: #{tpu_custom_call.1} parent=0 // pred_check_branch
    %10 = sbr.rel (0) target = $region9
  $region8: #{tpu_custom_call.1} parent=0 // pred_region
    _
  $region9: #{tpu_custom_call.1} parent=0 // pred_fallthru
    _
  %v11 = vld [vmem:[%s0] sm:$0xff]
  %v12 = vld [vmem:[%s0 + $0x8] sm:$0xff]
  %v13 = vld [vmem:[%s0 + $0x10] sm:$0xff]
  %v14 = vld [vmem:[%s0 + $0x18] sm:$0xff]
  %v15 = vld [vmem:[%s0 + $0x20] sm:$0xff]
  %v16 = vld [vmem:[%s0 + $0x28] sm:$0xff]
  %v17 = vld [vmem:[%s0 + $0x30] sm:$0xff]
  %v18 = vld [vmem:[%s0 + $0x38] sm:$0xff]
  %v19 = vld [vmem:[%s0 + $0x40] sm:$0xff]
  %v20 = vld [vmem:[%s0 + $0x48] sm:$0xff]
  %v21 = vld [vmem:[%s0 + $0x50] sm:$0xff]
  %v22 = vld [vmem:[%s0 + $0x58] sm:$0xff]
  %v23 = vld [vmem:[%s0 + $0x60] sm:$0xff]
  %v24 = vld [vmem:[%s0 + $0x68] sm:$0xff]
  %v25 = vld [vmem:[%s0 + $0x70] sm:$0xff]
  %v26 = vld [vmem:[%s0 + $0x78] sm:$0xff]
  %v27 = vmul.f32 %v11, %v11
  %v28 = vmul.f32 %v12, %v12
  %v29 = vmul.f32 %v13, %v13
  %v30 = vmul.f32 %v14, %v14
  %v31 = vmul.f32 %v15, %v15
  %v32 = vmul.f32 %v16, %v16
  %v33 = vmul.f32 %v17, %v17
  %v34 = vmul.f32 %v18, %v18
  %v35 = vmul.f32 %v19, %v19
  %v36 = vmul.f32 %v20, %v20
  %v37 = vmul.f32 %v21, %v21
  %v38 = vmul.f32 %v22, %v22
  %v39 = vmul.f32 %v23, %v23
  %v40 = vmul.f32 %v24, %v24
  %v41 = vmul.f32 %v25, %v25
  %v42 = vmul.f32 %v26, %v26
  %vm43 = vcmask 523264
  %v44 = vsel %vm43, %v27, 0.0
  %45 = vadd.xlane.f32.xlu0 %v44
  %v46 = vpop.xlane.xlu0 %45
  %v47 = vsel %vm43, %v28, 0.0
  %48 = vadd.xlane.f32.xlu0 %v47
  %v49 = vpop.xlane.xlu0 %48
  %v50 = vsel %vm43, %v29, 0.0
  %51 = vadd.xlane.f32.xlu0 %v50
  %v52 = vpop.xlane.xlu0 %51
  %v53 = vsel %vm43, %v30, 0.0
  %54 = vadd.xlane.f32.xlu0 %v53
  %v55 = vpop.xlane.xlu0 %54
  %v56 = vsel %vm43, %v31, 0.0
  %57 = vadd.xlane.f32.xlu0 %v56
  %v58 = vpop.xlane.xlu0 %57
  %v59 = vsel %vm43, %v32, 0.0
  %60 = vadd.xlane.f32.xlu0 %v59
  %v61 = vpop.xlane.xlu0 %60
  %v62 = vsel %vm43, %v33, 0.0
  %63 = vadd.xlane.f32.xlu0 %v62
  %v64 = vpop.xlane.xlu0 %63
  %v65 = vsel %vm43, %v34, 0.0
  %66 = vadd.xlane.f32.xlu0 %v65
  %v67 = vpop.xlane.xlu0 %66
  %v68 = vsel %vm43, %v35, 0.0
  %69 = vadd.xlane.f32.xlu0 %v68
  %v70 = vpop.xlane.xlu0 %69
  %v71 = vsel %vm43, %v36, 0.0
  %72 = vadd.xlane.f32.xlu0 %v71
  %v73 = vpop.xlane.xlu0 %72
  %v74 = vsel %vm43, %v37, 0.0
  %75 = vadd.xlane.f32.xlu0 %v74
  %v76 = vpop.xlane.xlu0 %75
  %v77 = vsel %vm43, %v38, 0.0
  %78 = vadd.xlane.f32.xlu0 %v77
  %v79 = vpop.xlane.xlu0 %78
  %v80 = vsel %vm43, %v39, 0.0
  %81 = vadd.xlane.f32.xlu0 %v80
  %v82 = vpop.xlane.xlu0 %81
  %v83 = vsel %vm43, %v40, 0.0
  %84 = vadd.xlane.f32.xlu0 %v83
  %v85 = vpop.xlane.xlu0 %84
  %v86 = vsel %vm43, %v41, 0.0
  %87 = vadd.xlane.f32.xlu0 %v86
  %v88 = vpop.xlane.xlu0 %87
  %v89 = vsel %vm43, %v42, 0.0
  %90 = vadd.xlane.f32.xlu0 %v89
  %v91 = vpop.xlane.xlu0 %90
  %v92 = vrcp.pop 64.0
  %v93 = vmul.f32 %v46, %v92
  %v94 = vmul.f32 %v49, %v92
  %v95 = vmul.f32 %v52, %v92
  %v96 = vmul.f32 %v55, %v92
  %v97 = vmul.f32 %v58, %v92
  %v98 = vmul.f32 %v61, %v92
  %v99 = vmul.f32 %v64, %v92
  %v100 = vmul.f32 %v67, %v92
  %v101 = vmul.f32 %v70, %v92
  %v102 = vmul.f32 %v73, %v92
  %v103 = vmul.f32 %v76, %v92
  %v104 = vmul.f32 %v79, %v92
  %v105 = vmul.f32 %v82, %v92
  %v106 = vmul.f32 %v85, %v92
  %v107 = vmul.f32 %v88, %v92
  %v108 = vmul.f32 %v91, %v92
  %v109 = vadd.f32 %v93, 1e-06
  %v110 = vadd.f32 %v94, 1e-06
  %v111 = vadd.f32 %v95, 1e-06
  %v112 = vadd.f32 %v96, 1e-06
  %v113 = vadd.f32 %v97, 1e-06
  %v114 = vadd.f32 %v98, 1e-06
  %v115 = vadd.f32 %v99, 1e-06
  %v116 = vadd.f32 %v100, 1e-06
  %v117 = vadd.f32 %v101, 1e-06
  %v118 = vadd.f32 %v102, 1e-06
  %v119 = vadd.f32 %v103, 1e-06
  %v120 = vadd.f32 %v104, 1e-06
  %v121 = vadd.f32 %v105, 1e-06
  %v122 = vadd.f32 %v106, 1e-06
  %v123 = vadd.f32 %v107, 1e-06
  %v124 = vadd.f32 %v108, 1e-06
  %v125 = vrsqrt.pop %v109
  %v126 = vrsqrt.pop %v110
  %v127 = vrsqrt.pop %v111
  %v128 = vrsqrt.pop %v112
  %v129 = vrsqrt.pop %v113
  %v130 = vrsqrt.pop %v114
  %v131 = vrsqrt.pop %v115
  %v132 = vrsqrt.pop %v116
  %v133 = vrsqrt.pop %v117
  %v134 = vrsqrt.pop %v118
  %v135 = vrsqrt.pop %v119
  %v136 = vrsqrt.pop %v120
  %v137 = vrsqrt.pop %v121
  %v138 = vrsqrt.pop %v122
  %v139 = vrsqrt.pop %v123
  %v140 = vrsqrt.pop %v124
  %v141 = vmul.f32 %v11, %v125
  %v142 = vmul.f32 %v12, %v126
  %v143 = vmul.f32 %v13, %v127
  %v144 = vmul.f32 %v14, %v128
  %v145 = vmul.f32 %v15, %v129
  %v146 = vmul.f32 %v16, %v130
  %v147 = vmul.f32 %v17, %v131
  %v148 = vmul.f32 %v18, %v132
  %v149 = vmul.f32 %v19, %v133
  %v150 = vmul.f32 %v20, %v134
  %v151 = vmul.f32 %v21, %v135
  %v152 = vmul.f32 %v22, %v136
  %v153 = vmul.f32 %v23, %v137
  %v154 = vmul.f32 %v24, %v138
  %v155 = vmul.f32 %v25, %v139
  %v156 = vmul.f32 %v26, %v140
  %v157 = vld [vmem:[%s1] sm:$0x1]
  %v159 = vlaneseq
  %v160 = vshrl.u32 %v159, 7
  %v161 = vsub.s32 0, %v160
  %v162 = vrot.slane %v157, %v161
  %v164 = vmul.f32 %v141, %v162
  %v165 = vmul.f32 %v142, %v162
  %v166 = vmul.f32 %v143, %v162
  %v167 = vmul.f32 %v144, %v162
  %v168 = vmul.f32 %v145, %v162
  %v169 = vmul.f32 %v146, %v162
  %v170 = vmul.f32 %v147, %v162
  %v171 = vmul.f32 %v148, %v162
  %v172 = vmul.f32 %v149, %v162
  %v173 = vmul.f32 %v150, %v162
  %v174 = vmul.f32 %v151, %v162
  %v175 = vmul.f32 %v152, %v162
  %v176 = vmul.f32 %v153, %v162
  %v177 = vmul.f32 %v154, %v162
  %v178 = vmul.f32 %v155, %v162
  %v179 = vmul.f32 %v156, %v162
  %v180 = vpack.c.bf16 %v165, %v164
  %v181 = vpack.c.bf16 %v167, %v166
  %v182 = vpack.c.bf16 %v169, %v168
  %v183 = vpack.c.bf16 %v171, %v170
  %v184 = vpack.c.bf16 %v173, %v172
  %v185 = vpack.c.bf16 %v175, %v174
  %v186 = vpack.c.bf16 %v177, %v176
  %v187 = vpack.c.bf16 %v179, %v178
  %v196 = vunpack.c.l.b16 %v180
  %v197 = vunpack.c.h.b16 %v180
  %v198 = vunpack.c.l.b16 %v181
  %v199 = vunpack.c.h.b16 %v181
  %v200 = vunpack.c.l.b16 %v182
  %v201 = vunpack.c.h.b16 %v182
  %v202 = vunpack.c.l.b16 %v183
  %v203 = vunpack.c.h.b16 %v183
  %v204 = vunpack.c.l.b16 %v184
  %v205 = vunpack.c.h.b16 %v184
  %v206 = vunpack.c.l.b16 %v185
  %v207 = vunpack.c.h.b16 %v185
  %v208 = vunpack.c.l.b16 %v186
  %v209 = vunpack.c.h.b16 %v186
  %v210 = vunpack.c.l.b16 %v187
  %v211 = vunpack.c.h.b16 %v187
  %v212 = vpack.c.b16 %v196, %v196
  %v213 = vpack.c.b16 %v197, %v197
  %v214 = vpack.c.b16 %v198, %v198
  %v215 = vpack.c.b16 %v199, %v199
  %v216 = vpack.c.b16 %v200, %v200
  %v217 = vpack.c.b16 %v201, %v201
  %v218 = vpack.c.b16 %v202, %v202
  %v219 = vpack.c.b16 %v203, %v203
  %v220 = vpack.c.b16 %v204, %v204
  %v221 = vpack.c.b16 %v205, %v205
  %v222 = vpack.c.b16 %v206, %v206
  %v223 = vpack.c.b16 %v207, %v207
  %v224 = vpack.c.b16 %v208, %v208
  %v225 = vpack.c.b16 %v209, %v209
  %v226 = vpack.c.b16 %v210, %v210
  %v227 = vpack.c.b16 %v211, %v211
  %vm244 = vcmask 519168
  %245 = vst.msk [vmem:[%s2] sm:$0xf] %vm244, %v212
  %246 = vst.msk [vmem:[%s2 + $0x4] sm:$0xf] %vm244, %v213
  %247 = vst.msk [vmem:[%s2 + $0x8] sm:$0xf] %vm244, %v214
  %248 = vst.msk [vmem:[%s2 + $0xc] sm:$0xf] %vm244, %v215
  %249 = vst.msk [vmem:[%s2 + $0x10] sm:$0xf] %vm244, %v216
  %250 = vst.msk [vmem:[%s2 + $0x14] sm:$0xf] %vm244, %v217
  %251 = vst.msk [vmem:[%s2 + $0x18] sm:$0xf] %vm244, %v218
  %252 = vst.msk [vmem:[%s2 + $0x1c] sm:$0xf] %vm244, %v219
  %253 = vst.msk [vmem:[%s2 + $0x20] sm:$0xf] %vm244, %v220
  %254 = vst.msk [vmem:[%s2 + $0x24] sm:$0xf] %vm244, %v221
  %255 = vst.msk [vmem:[%s2 + $0x28] sm:$0xf] %vm244, %v222
  %256 = vst.msk [vmem:[%s2 + $0x2c] sm:$0xf] %vm244, %v223
  %257 = vst.msk [vmem:[%s2 + $0x30] sm:$0xf] %vm244, %v224
  %258 = vst.msk [vmem:[%s2 + $0x34] sm:$0xf] %vm244, %v225
  %259 = vst.msk [vmem:[%s2 + $0x38] sm:$0xf] %vm244, %v226
  %260 = vst.msk [vmem:[%s2 + $0x3c] sm:$0xf] %vm244, %v227
  // Predicated region
  $region10: #{tpu_custom_call.1} parent=0 // pred_check
    _
  $region11: #{tpu_custom_call.1} parent=0 // pred_check_branch
    %262 = sbr.rel (0) target = $region13
  $region12: #{tpu_custom_call.1} parent=0 // pred_region
    _
  $region13: #{tpu_custom_call.1} parent=0 // pred_fallthru
    _
  // Predicated region
  $region14: #{tpu_custom_call.1} parent=0 // pred_check
    _
  $region15: #{tpu_custom_call.1} parent=0 // pred_check_branch
    %264 = sbr.rel (0) target = $region17
  $region16: #{tpu_custom_call.1} parent=0 // pred_region
    _
  $region17: #{tpu_custom_call.1} parent=0 // pred_fallthru
    _

</llo_original>
